<compile_context>
chip_gen: v5e
topology: v5e:2x2
jax: 0.10.0
libtpu: 0.0.40
codegen_flags: <defaults>
</compile_context>

<pallas_src>
import math
from functools import partial

import jax
import jax.numpy as jnp
from jax import lax
from jax.experimental import pallas as pl
from jax.experimental.pallas import tpu as pltpu

BETA = 0.95
THRESHOLD = 1.0


def _round_up(x, m):
    return (x + m - 1) // m * m


def _pick_tn(f_out_pad):
    """Largest 128-multiple tile (<=512) dividing F_out_pad. >1 tile enables the 'parallel'
    N grid axis (v7x dual-TensorCore); a single tile for small F_out."""
    if f_out_pad <= 256:
        return f_out_pad
    for cand in (512, 384, 256, 128):
        if f_out_pad % cand == 0:
            return cand
    return f_out_pad


def prepare_weight(weight):
    """weight: [F_out, F_in] (PyTorch nn.Linear layout) -> padded bf16 [K_pad, F_out_pad].

    Call ONCE outside the rollout (replaces any per-call `weight.T`)."""
    f_out, f_in = weight.shape
    k_pad = _round_up(f_in, 16)         # bf16 sublane packing on the MXU K dim
    f_out_pad = _round_up(f_out, 128)   # lane-dense outputs
    wt = jnp.zeros((k_pad, f_out_pad), jnp.bfloat16)
    wt = wt.at[:f_in, :f_out].set(weight.T.astype(jnp.bfloat16))
    return wt


def _make_kernel(tc, b_pad, t_total, t_pad):
    needs_mask = (t_pad != t_total)

    def kernel(inp_ref, wt_ref, mem0_ref, spk_ref, mem_ref, cur_ref):
        # grid = (n_tiles, time_blocks); time is the inner, sequential ("arbitrary") axis.
        t = pl.program_id(1)

        # Load the initial membrane into the resident output block at the first time block.
        @pl.when(t == 0)
        def _():
            mem_ref[...] = mem0_ref[...]

        # ONE MXU pass for all tc timesteps of this block:
        #   (tc*B_pad, K) bf16 @ (K, TN) bf16 -> f32, staged in VMEM scratch.
        cur_ref[...] = jnp.dot(inp_ref[...], wt_ref[...],
                               preferred_element_type=jnp.float32)

        def step(i, mem):
            off = pl.multiple_of(i * b_pad, b_pad)
            cur = cur_ref[pl.ds(off, b_pad), :]
            # snntorch "subtract" reset uses the PRE-update membrane.
            reset = (mem > THRESHOLD).astype(jnp.float32)
            mem_upd = BETA * mem + cur - reset * THRESHOLD
            if needs_mask:
                valid = (t * tc + i) < t_total       # skip membrane update on padded steps
                mem_new = jnp.where(valid, mem_upd, mem)
            else:
                mem_new = mem_upd
            spk_ref[pl.ds(off, b_pad), :] = (mem_new > THRESHOLD).astype(spk_ref.dtype)
            return mem_new

        mem_ref[...] = lax.fori_loop(0, tc, step, mem_ref[...], unroll=True)

    return kernel


@partial(jax.jit, static_argnames=("tc", "tn"))
def audio_cortex_rollout(inp_seq, wt_prepped, mem0, *, tc=16, tn=None):
    """Fused multi-timestep LIF rollout.

    inp_seq: [T, B, F_in] (any float dtype), wt_prepped: prepare_weight(W),
    mem0: [B, F_out] f32.  Returns (spk_seq [T, B, F_out] bf16, mem_final [B, F_out] f32).
    """
    T, B, F_in = inp_seq.shape
    k_pad, f_out_pad = wt_prepped.shape
    F_out = mem0.shape[1]

    b_pad = _round_up(B, 8)
    tc = max(1, min(tc, T))
    t_pad = _round_up(T, tc)
    t_blocks = t_pad // tc
    tn_ = _pick_tn(f_out_pad) if tn is None else tn
    assert tn_ % 128 == 0 and f_out_pad % tn_ == 0
    num_n = f_out_pad // tn_

    # Pad the activation sequence ONLY if needed (otherwise no extra HBM pass).
    inp_cast = inp_seq.astype(jnp.bfloat16)
    if (t_pad, b_pad, k_pad) != (T, B, F_in):
        inp_p = jnp.zeros((t_pad, b_pad, k_pad), jnp.bfloat16)
        inp_p = inp_p.at[:T, :B, :F_in].set(inp_cast)
    else:
        inp_p = inp_cast
    # Collapse (tc, B_pad) into one matmul M dim per time block: free metadata reshape.
    inp_blk = inp_p.reshape(t_blocks, tc * b_pad, k_pad)

    mem_cast = mem0.astype(jnp.float32)
    if (b_pad, f_out_pad) != (B, F_out):
        mem_p = jnp.zeros((b_pad, f_out_pad), jnp.float32)
        mem_p = mem_p.at[:B, :F_out].set(mem_cast)
    else:
        mem_p = mem_cast

    flops = 2 * t_pad * b_pad * k_pad * f_out_pad
    bytes_accessed = (
        inp_blk.size * 2                   # bf16 activations in
        + wt_prepped.size * 2              # bf16 weight (resident, read ~once per N tile)
        + mem_p.size * 4 * 2               # f32 membrane in + out
        + t_pad * b_pad * f_out_pad * 2    # bf16 spikes out
    )

    kernel = _make_kernel(tc, b_pad, T, t_pad)

    spk_blk, mem_final_p = pl.pallas_call(
        kernel,
        out_shape=(
            jax.ShapeDtypeStruct((t_blocks, tc * b_pad, f_out_pad), jnp.bfloat16),
            jax.ShapeDtypeStruct((b_pad, f_out_pad), jnp.float32),
        ),
        grid_spec=pltpu.PrefetchScalarGridSpec(
            num_scalar_prefetch=0,
            grid=(num_n, t_blocks),
            in_specs=[
                # Tc-blocked activation slab (leading time-block dim squeezed away).
                pl.BlockSpec((None, tc * b_pad, k_pad), lambda n, t: (t, 0, 0)),
                # Weight N-tile: resident across the whole time loop.
                pl.BlockSpec((k_pad, tn_), lambda n, t: (0, n)),
                # Initial membrane N-tile: resident, read once at t == 0.
                pl.BlockSpec((b_pad, tn_), lambda n, t: (0, n)),
            ],
            out_specs=[
                # Lane-dense spike slab for this (n, t) block.
                pl.BlockSpec((None, tc * b_pad, tn_), lambda n, t: (t, 0, n)),
                # Membrane accumulator: same block across time -> written back once per N tile.
                pl.BlockSpec((b_pad, tn_), lambda n, t: (0, n)),
            ],
            scratch_shapes=[pltpu.VMEM((tc * b_pad, tn_), jnp.float32)],
        ),
        compiler_params=pltpu.CompilerParams(
            dimension_semantics=("parallel", "arbitrary"),
        ),
        cost_estimate=pl.CostEstimate(
            flops=flops, transcendentals=0, bytes_accessed=bytes_accessed
        ),
        # Reuse mem0's buffer for the final membrane (state updated in place).
        input_output_aliases={2: 1},
    )(inp_blk, wt_prepped, mem_p)

    spk_seq = spk_blk.reshape(t_pad, b_pad, f_out_pad)[:T, :B, :F_out]
    mem_final = mem_final_p[:B, :F_out]
    return spk_seq, mem_final


def audio_cortex_forward(inp, wt_prepped, mem):
    """Single-step forward matching AudioCortex.forward(inp, mem) -> (spk, mem)."""
    spk_seq, mem_new = audio_cortex_rollout(inp[None], wt_prepped, mem, tc=1)
    return spk_seq[0], mem_new


if __name__ == "__main__":
    # Small shapes consistent with the module: Linear(in_features -> out_features), LIF state.
    T = 8
    B = 8
    in_features = 32
    out_features = 16

    key = jax.random.PRNGKey(0)
    k_w, k_x, k_m = jax.random.split(key, 3)

    # Basic.reset_parameters style init: U(-stdv, stdv), stdv = 1/sqrt(out_features)
    stdv = 1.0 / math.sqrt(out_features)
    weight = jax.random.uniform(
        k_w, (out_features, in_features), jnp.float32, minval=-stdv, maxval=stdv
    )

    inp_seq = jax.random.normal(k_x, (T, B, in_features), jnp.float32)
    mem0 = jax.random.normal(k_m, (B, out_features), jnp.float32)

    # Prepare the weight once (outside the hot path), then run the fused rollout.
    wt = prepare_weight(weight)
    spk_seq, mem_final = audio_cortex_rollout(inp_seq, wt, mem0)
    jax.block_until_ready((spk_seq, mem_final))

    # Plain-JAX reference with identical bf16 matmul inputs / f32 LIF math.
    # NOTE: bit-level parity with PyTorch f32 Linear would require an f32 MXU path;
    # here both kernel and reference use bf16 inputs + f32 accumulation.
    w_bf = weight.astype(jnp.bfloat16)
    mem_r = mem0
    spk_ref_steps = []
    for t in range(T):
        cur_r = jnp.dot(
            inp_seq[t].astype(jnp.bfloat16), w_bf.T, preferred_element_type=jnp.float32
        )
        reset_r = (mem_r > THRESHOLD).astype(jnp.float32)
        mem_r = BETA * mem_r + cur_r - reset_r * THRESHOLD
        spk_ref_steps.append((mem_r > THRESHOLD).astype(jnp.float32))
    spk_ref = jnp.stack(spk_ref_steps)

    assert jnp.allclose(mem_final, mem_r, atol=1e-4), "final membrane mismatch"
    assert jnp.array_equal(spk_seq.astype(jnp.float32), spk_ref), "spike train mismatch"

    # Ragged-T path (tc does not divide T -> masked padded steps must not perturb the state).
    spk_seq3, mem_final3 = audio_cortex_rollout(inp_seq, wt, mem0, tc=3)
    jax.block_until_ready((spk_seq3, mem_final3))
    assert jnp.allclose(mem_final3, mem_r, atol=1e-4), "ragged-T membrane mismatch"
    assert jnp.array_equal(spk_seq3.astype(jnp.float32), spk_ref), "ragged-T spike mismatch"

    # Single-step call (module-equivalent forward(inp, mem)).
    spk1, mem1 = audio_cortex_forward(inp_seq[0], wt, mem0)
    jax.block_until_ready((spk1, mem1))
    assert jnp.array_equal(spk1.astype(jnp.float32), spk_ref[0]), "1-step spike mismatch"

    print("KERNEL_OK")
</pallas_src>

<mosaic_0001>
module attributes {stable_mosaic.version = 11 : i64} {
  func.func @kernel(%arg0: i32, %arg1: i32, %arg2: memref<1x64x32xbf16, #tpu.memory_space<vmem>>, %arg3: memref<32x128xbf16, #tpu.memory_space<vmem>>, %arg4: memref<8x128xf32, #tpu.memory_space<vmem>>, %arg5: memref<1x64x128xbf16, #tpu.memory_space<vmem>>, %arg6: memref<8x128xf32, #tpu.memory_space<vmem>>, %arg7: memref<64x128xf32, #tpu.memory_space<vmem>>) attributes {dimension_semantics = [#tpu.dimension_semantics<parallel>, #tpu.dimension_semantics<arbitrary>], iteration_bounds = array<i64: 1, 1>, scalar_prefetch = 0 : i64, scratch_operands = 1 : i64, tpu.core_type = #tpu.core_type<tc>, window_params = [{transform_indices = @transform_0, window_bounds = array<i64: 1, 64, 32>}, {transform_indices = @transform_1, window_bounds = array<i64: 32, 128>}, {transform_indices = @transform_2, window_bounds = array<i64: 8, 128>}, {transform_indices = @transform_3, window_bounds = array<i64: 1, 64, 128>}, {transform_indices = @transform_4, window_bounds = array<i64: 8, 128>}]} {
    %c0_i32 = arith.constant 0 : i32
    %0 = arith.cmpi eq, %arg1, %c0_i32 : i32
    %1 = arith.extui %0 : i1 to i32
    %c0_i32_0 = arith.constant 0 : i32
    %2 = arith.cmpi ne, %1, %c0_i32_0 : i32
    scf.if %2 {
      %c0_76 = arith.constant 0 : index
      %c0_77 = arith.constant 0 : index
      %194 = vector.load %arg4[%c0_76, %c0_77] : memref<8x128xf32, #tpu.memory_space<vmem>>, vector<8x128xf32>
      %c0_78 = arith.constant 0 : index
      %c0_79 = arith.constant 0 : index
      %195 = vector.load %arg6[%c0_78, %c0_79] : memref<8x128xf32, #tpu.memory_space<vmem>>, vector<8x128xf32>
      tpu.vector_store %arg6[%c0_78, %c0_79], %194 {strides = array<i32>} : memref<8x128xf32, #tpu.memory_space<vmem>>, vector<8x128xf32>,
    } else {
    }
    %c0 = arith.constant 0 : index
    %c0_1 = arith.constant 0 : index
    %c0_2 = arith.constant 0 : index
    %3 = vector.load %arg2[%c0, %c0_1, %c0_2] : memref<1x64x32xbf16, #tpu.memory_space<vmem>>, vector<1x64x32xbf16>
    %4 = vector.shape_cast %3 : vector<1x64x32xbf16> to vector<64x32xbf16>
    %c0_3 = arith.constant 0 : index
    %c0_4 = arith.constant 0 : index
    %5 = vector.load %arg3[%c0_3, %c0_4] : memref<32x128xbf16, #tpu.memory_space<vmem>>, vector<32x128xbf16>
    %cst = arith.constant dense<0.000000e+00> : vector<64x128xf32>
    %6 = tpu.matmul %4, %5, %cst {dimension_numbers = #tpu.dot_dimension_numbers<[1], [0], [0], [1], [0, 0, 1, 1], [], []>} : vector<64x32xbf16>, vector<32x128xbf16>, vector<64x128xf32> -> vector<64x128xf32>
    %c0_5 = arith.constant 0 : index
    %c0_6 = arith.constant 0 : index
    %7 = vector.load %arg7[%c0_5, %c0_6] : memref<64x128xf32, #tpu.memory_space<vmem>>, vector<64x128xf32>
    tpu.vector_store %arg7[%c0_5, %c0_6], %6 {strides = array<i32>} : memref<64x128xf32, #tpu.memory_space<vmem>>, vector<64x128xf32>,
    %c0_7 = arith.constant 0 : index
    %c0_8 = arith.constant 0 : index
    %8 = vector.load %arg6[%c0_7, %c0_8] : memref<8x128xf32, #tpu.memory_space<vmem>>, vector<8x128xf32>
    %c0_i32_9 = arith.constant 0 : i32
    %c8_i32 = arith.constant 8 : i32
    %9 = arith.muli %c0_i32_9, %c8_i32 : i32
    %10 = tpu.assume_multiple %9, 8 : i32
    %11 = arith.index_cast %10 : i32 to index
    %c0_10 = arith.constant 0 : index
    %12 = vector.load %arg7[%11, %c0_10] : memref<64x128xf32, #tpu.memory_space<vmem>>, vector<8x128xf32>
    %cst_11 = arith.constant 1.000000e+00 : f32
    %13 = vector.broadcast %cst_11 : f32 to vector<8x128xf32>
    %14 = arith.cmpf ogt, %8, %13 : vector<8x128xf32>
    %15 = arith.extui %14 : vector<8x128xi1> to vector<8x128xi32>
    %16 = arith.sitofp %15 : vector<8x128xi32> to vector<8x128xf32>
    %cst_12 = arith.constant 0.949999988 : f32
    %17 = vector.broadcast %cst_12 : f32 to vector<8x128xf32>
    %18 = arith.mulf %17, %8 : vector<8x128xf32>
    %19 = arith.addf %18, %12 : vector<8x128xf32>
    %cst_13 = arith.constant 1.000000e+00 : f32
    %20 = vector.broadcast %cst_13 : f32 to vector<8x128xf32>
    %21 = arith.mulf %16, %20 : vector<8x128xf32>
    %22 = arith.subf %19, %21 : vector<8x128xf32>
    %cst_14 = arith.constant 1.000000e+00 : f32
    %23 = vector.broadcast %cst_14 : f32 to vector<8x128xf32>
    %24 = arith.cmpf ogt, %22, %23 : vector<8x128xf32>
    %25 = arith.extui %24 : vector<8x128xi1> to vector<8x128xi32>
    %26 = arith.sitofp %25 : vector<8x128xi32> to vector<8x128xf32>
    %27 = arith.truncf %26 : vector<8x128xf32> to vector<8x128xbf16>
    %c0_15 = arith.constant 0 : index
    %28 = arith.index_cast %10 : i32 to index
    %c0_16 = arith.constant 0 : index
    %29 = vector.load %arg5[%c0_15, %28, %c0_16] : memref<1x64x128xbf16, #tpu.memory_space<vmem>>, vector<1x8x128xbf16>
    %30 = vector.shape_cast %29 : vector<1x8x128xbf16> to vector<8x128xbf16>
    %31 = vector.shape_cast %27 : vector<8x128xbf16> to vector<1x8x128xbf16>
    tpu.vector_store %arg5[%c0_15, %28, %c0_16], %31 {strides = array<i32>} : memref<1x64x128xbf16, #tpu.memory_space<vmem>>, vector<1x8x128xbf16>,
    %c1_i32 = arith.constant 1 : i32
    %c8_i32_17 = arith.constant 8 : i32
    %32 = arith.muli %c1_i32, %c8_i32_17 : i32
    %33 = tpu.assume_multiple %32, 8 : i32
    %34 = arith.index_cast %33 : i32 to index
    %c0_18 = arith.constant 0 : index
    %35 = vector.load %arg7[%34, %c0_18] : memref<64x128xf32, #tpu.memory_space<vmem>>, vector<8x128xf32>
    %cst_19 = arith.constant 1.000000e+00 : f32
    %36 = vector.broadcast %cst_19 : f32 to vector<8x128xf32>
    %37 = arith.cmpf ogt, %22, %36 : vector<8x128xf32>
    %38 = arith.extui %37 : vector<8x128xi1> to vector<8x128xi32>
    %39 = arith.sitofp %38 : vector<8x128xi32> to vector<8x128xf32>
    %cst_20 = arith.constant 0.949999988 : f32
    %40 = vector.broadcast %cst_20 : f32 to vector<8x128xf32>
    %41 = arith.mulf %40, %22 : vector<8x128xf32>
    %42 = arith.addf %41, %35 : vector<8x128xf32>
    %cst_21 = arith.constant 1.000000e+00 : f32
    %43 = vector.broadcast %cst_21 : f32 to vector<8x128xf32>
    %44 = arith.mulf %39, %43 : vector<8x128xf32>
    %45 = arith.subf %42, %44 : vector<8x128xf32>
    %cst_22 = arith.constant 1.000000e+00 : f32
    %46 = vector.broadcast %cst_22 : f32 to vector<8x128xf32>
    %47 = arith.cmpf ogt, %45, %46 : vector<8x128xf32>
    %48 = arith.extui %47 : vector<8x128xi1> to vector<8x128xi32>
    %49 = arith.sitofp %48 : vector<8x128xi32> to vector<8x128xf32>
    %50 = arith.truncf %49 : vector<8x128xf32> to vector<8x128xbf16>
    %c0_23 = arith.constant 0 : index
    %51 = arith.index_cast %33 : i32 to index
    %c0_24 = arith.constant 0 : index
    %52 = vector.load %arg5[%c0_23, %51, %c0_24] : memref<1x64x128xbf16, #tpu.memory_space<vmem>>, vector<1x8x128xbf16>
    %53 = vector.shape_cast %52 : vector<1x8x128xbf16> to vector<8x128xbf16>
    %54 = vector.shape_cast %50 : vector<8x128xbf16> to vector<1x8x128xbf16>
    tpu.vector_store %arg5[%c0_23, %51, %c0_24], %54 {strides = array<i32>} : memref<1x64x128xbf16, #tpu.memory_space<vmem>>, vector<1x8x128xbf16>,
    %c2_i32 = arith.constant 2 : i32
    %c8_i32_25 = arith.constant 8 : i32
    %55 = arith.muli %c2_i32, %c8_i32_25 : i32
    %56 = tpu.assume_multiple %55, 8 : i32
    %57 = arith.index_cast %56 : i32 to index
    %c0_26 = arith.constant 0 : index
    %58 = vector.load %arg7[%57, %c0_26] : memref<64x128xf32, #tpu.memory_space<vmem>>, vector<8x128xf32>
    %cst_27 = arith.constant 1.000000e+00 : f32
    %59 = vector.broadcast %cst_27 : f32 to vector<8x128xf32>
    %60 = arith.cmpf ogt, %45, %59 : vector<8x128xf32>
    %61 = arith.extui %60 : vector<8x128xi1> to vector<8x128xi32>
    %62 = arith.sitofp %61 : vector<8x128xi32> to vector<8x128xf32>
    %cst_28 = arith.constant 0.949999988 : f32
    %63 = vector.broadcast %cst_28 : f32 to vector<8x128xf32>
    %64 = arith.mulf %63, %45 : vector<8x128xf32>
    %65 = arith.addf %64, %58 : vector<8x128xf32>
    %cst_29 = arith.constant 1.000000e+00 : f32
    %66 = vector.broadcast %cst_29 : f32 to vector<8x128xf32>
    %67 = arith.mulf %62, %66 : vector<8x128xf32>
    %68 = arith.subf %65, %67 : vector<8x128xf32>
    %cst_30 = arith.constant 1.000000e+00 : f32
    %69 = vector.broadcast %cst_30 : f32 to vector<8x128xf32>
    %70 = arith.cmpf ogt, %68, %69 : vector<8x128xf32>
    %71 = arith.extui %70 : vector<8x128xi1> to vector<8x128xi32>
    %72 = arith.sitofp %71 : vector<8x128xi32> to vector<8x128xf32>
    %73 = arith.truncf %72 : vector<8x128xf32> to vector<8x128xbf16>
    %c0_31 = arith.constant 0 : index
    %74 = arith.index_cast %56 : i32 to index
    %c0_32 = arith.constant 0 : index
    %75 = vector.load %arg5[%c0_31, %74, %c0_32] : memref<1x64x128xbf16, #tpu.memory_space<vmem>>, vector<1x8x128xbf16>
    %76 = vector.shape_cast %75 : vector<1x8x128xbf16> to vector<8x128xbf16>
    %77 = vector.shape_cast %73 : vector<8x128xbf16> to vector<1x8x128xbf16>
    tpu.vector_store %arg5[%c0_31, %74, %c0_32], %77 {strides = array<i32>} : memref<1x64x128xbf16, #tpu.memory_space<vmem>>, vector<1x8x128xbf16>,
    %c3_i32 = arith.constant 3 : i32
    %c8_i32_33 = arith.constant 8 : i32
    %78 = arith.muli %c3_i32, %c8_i32_33 : i32
    %79 = tpu.assume_multiple %78, 8 : i32
    %80 = arith.index_cast %79 : i32 to index
    %c0_34 = arith.constant 0 : index
    %81 = vector.load %arg7[%80, %c0_34] : memref<64x128xf32, #tpu.memory_space<vmem>>, vector<8x128xf32>
    %cst_35 = arith.constant 1.000000e+00 : f32
    %82 = vector.broadcast %cst_35 : f32 to vector<8x128xf32>
    %83 = arith.cmpf ogt, %68, %82 : vector<8x128xf32>
    %84 = arith.extui %83 : vector<8x128xi1> to vector<8x128xi32>
    %85 = arith.sitofp %84 : vector<8x128xi32> to vector<8x128xf32>
    %cst_36 = arith.constant 0.949999988 : f32
    %86 = vector.broadcast %cst_36 : f32 to vector<8x128xf32>
    %87 = arith.mulf %86, %68 : vector<8x128xf32>
    %88 = arith.addf %87, %81 : vector<8x128xf32>
    %cst_37 = arith.constant 1.000000e+00 : f32
    %89 = vector.broadcast %cst_37 : f32 to vector<8x128xf32>
    %90 = arith.mulf %85, %89 : vector<8x128xf32>
    %91 = arith.subf %88, %90 : vector<8x128xf32>
    %cst_38 = arith.constant 1.000000e+00 : f32
    %92 = vector.broadcast %cst_38 : f32 to vector<8x128xf32>
    %93 = arith.cmpf ogt, %91, %92 : vector<8x128xf32>
    %94 = arith.extui %93 : vector<8x128xi1> to vector<8x128xi32>
    %95 = arith.sitofp %94 : vector<8x128xi32> to vector<8x128xf32>
    %96 = arith.truncf %95 : vector<8x128xf32> to vector<8x128xbf16>
    %c0_39 = arith.constant 0 : index
    %97 = arith.index_cast %79 : i32 to index
    %c0_40 = arith.constant 0 : index
    %98 = vector.load %arg5[%c0_39, %97, %c0_40] : memref<1x64x128xbf16, #tpu.memory_space<vmem>>, vector<1x8x128xbf16>
    %99 = vector.shape_cast %98 : vector<1x8x128xbf16> to vector<8x128xbf16>
    %100 = vector.shape_cast %96 : vector<8x128xbf16> to vector<1x8x128xbf16>
    tpu.vector_store %arg5[%c0_39, %97, %c0_40], %100 {strides = array<i32>} : memref<1x64x128xbf16, #tpu.memory_space<vmem>>, vector<1x8x128xbf16>,
    %c4_i32 = arith.constant 4 : i32
    %c8_i32_41 = arith.constant 8 : i32
    %101 = arith.muli %c4_i32, %c8_i32_41 : i32
    %102 = tpu.assume_multiple %101, 8 : i32
    %103 = arith.index_cast %102 : i32 to index
    %c0_42 = arith.constant 0 : index
    %104 = vector.load %arg7[%103, %c0_42] : memref<64x128xf32, #tpu.memory_space<vmem>>, vector<8x128xf32>
    %cst_43 = arith.constant 1.000000e+00 : f32
    %105 = vector.broadcast %cst_43 : f32 to vector<8x128xf32>
    %106 = arith.cmpf ogt, %91, %105 : vector<8x128xf32>
    %107 = arith.extui %106 : vector<8x128xi1> to vector<8x128xi32>
    %108 = arith.sitofp %107 : vector<8x128xi32> to vector<8x128xf32>
    %cst_44 = arith.constant 0.949999988 : f32
    %109 = vector.broadcast %cst_44 : f32 to vector<8x128xf32>
    %110 = arith.mulf %109, %91 : vector<8x128xf32>
    %111 = arith.addf %110, %104 : vector<8x128xf32>
    %cst_45 = arith.constant 1.000000e+00 : f32
    %112 = vector.broadcast %cst_45 : f32 to vector<8x128xf32>
    %113 = arith.mulf %108, %112 : vector<8x128xf32>
    %114 = arith.subf %111, %113 : vector<8x128xf32>
    %cst_46 = arith.constant 1.000000e+00 : f32
    %115 = vector.broadcast %cst_46 : f32 to vector<8x128xf32>
    %116 = arith.cmpf ogt, %114, %115 : vector<8x128xf32>
    %117 = arith.extui %116 : vector<8x128xi1> to vector<8x128xi32>
    %118 = arith.sitofp %117 : vector<8x128xi32> to vector<8x128xf32>
    %119 = arith.truncf %118 : vector<8x128xf32> to vector<8x128xbf16>
    %c0_47 = arith.constant 0 : index
    %120 = arith.index_cast %102 : i32 to index
    %c0_48 = arith.constant 0 : index
    %121 = vector.load %arg5[%c0_47, %120, %c0_48] : memref<1x64x128xbf16, #tpu.memory_space<vmem>>, vector<1x8x128xbf16>
    %122 = vector.shape_cast %121 : vector<1x8x128xbf16> to vector<8x128xbf16>
    %123 = vector.shape_cast %119 : vector<8x128xbf16> to vector<1x8x128xbf16>
    tpu.vector_store %arg5[%c0_47, %120, %c0_48], %123 {strides = array<i32>} : memref<1x64x128xbf16, #tpu.memory_space<vmem>>, vector<1x8x128xbf16>,
    %c5_i32 = arith.constant 5 : i32
    %c8_i32_49 = arith.constant 8 : i32
    %124 = arith.muli %c5_i32, %c8_i32_49 : i32
    %125 = tpu.assume_multiple %124, 8 : i32
    %126 = arith.index_cast %125 : i32 to index
    %c0_50 = arith.constant 0 : index
    %127 = vector.load %arg7[%126, %c0_50] : memref<64x128xf32, #tpu.memory_space<vmem>>, vector<8x128xf32>
    %cst_51 = arith.constant 1.000000e+00 : f32
    %128 = vector.broadcast %cst_51 : f32 to vector<8x128xf32>
    %129 = arith.cmpf ogt, %114, %128 : vector<8x128xf32>
    %130 = arith.extui %129 : vector<8x128xi1> to vector<8x128xi32>
    %131 = arith.sitofp %130 : vector<8x128xi32> to vector<8x128xf32>
    %cst_52 = arith.constant 0.949999988 : f32
    %132 = vector.broadcast %cst_52 : f32 to vector<8x128xf32>
    %133 = arith.mulf %132, %114 : vector<8x128xf32>
    %134 = arith.addf %133, %127 : vector<8x128xf32>
    %cst_53 = arith.constant 1.000000e+00 : f32
    %135 = vector.broadcast %cst_53 : f32 to vector<8x128xf32>
    %136 = arith.mulf %131, %135 : vector<8x128xf32>
    %137 = arith.subf %134, %136 : vector<8x128xf32>
    %cst_54 = arith.constant 1.000000e+00 : f32
    %138 = vector.broadcast %cst_54 : f32 to vector<8x128xf32>
    %139 = arith.cmpf ogt, %137, %138 : vector<8x128xf32>
    %140 = arith.extui %139 : vector<8x128xi1> to vector<8x128xi32>
    %141 = arith.sitofp %140 : vector<8x128xi32> to vector<8x128xf32>
    %142 = arith.truncf %141 : vector<8x128xf32> to vector<8x128xbf16>
    %c0_55 = arith.constant 0 : index
    %143 = arith.index_cast %125 : i32 to index
    %c0_56 = arith.constant 0 : index
    %144 = vector.load %arg5[%c0_55, %143, %c0_56] : memref<1x64x128xbf16, #tpu.memory_space<vmem>>, vector<1x8x128xbf16>
    %145 = vector.shape_cast %144 : vector<1x8x128xbf16> to vector<8x128xbf16>
    %146 = vector.shape_cast %142 : vector<8x128xbf16> to vector<1x8x128xbf16>
    tpu.vector_store %arg5[%c0_55, %143, %c0_56], %146 {strides = array<i32>} : memref<1x64x128xbf16, #tpu.memory_space<vmem>>, vector<1x8x128xbf16>,
    %c6_i32 = arith.constant 6 : i32
    %c8_i32_57 = arith.constant 8 : i32
    %147 = arith.muli %c6_i32, %c8_i32_57 : i32
    %148 = tpu.assume_multiple %147, 8 : i32
    %149 = arith.index_cast %148 : i32 to index
    %c0_58 = arith.constant 0 : index
    %150 = vector.load %arg7[%149, %c0_58] : memref<64x128xf32, #tpu.memory_space<vmem>>, vector<8x128xf32>
    %cst_59 = arith.constant 1.000000e+00 : f32
    %151 = vector.broadcast %cst_59 : f32 to vector<8x128xf32>
    %152 = arith.cmpf ogt, %137, %151 : vector<8x128xf32>
    %153 = arith.extui %152 : vector<8x128xi1> to vector<8x128xi32>
    %154 = arith.sitofp %153 : vector<8x128xi32> to vector<8x128xf32>
    %cst_60 = arith.constant 0.949999988 : f32
    %155 = vector.broadcast %cst_60 : f32 to vector<8x128xf32>
    %156 = arith.mulf %155, %137 : vector<8x128xf32>
    %157 = arith.addf %156, %150 : vector<8x128xf32>
    %cst_61 = arith.constant 1.000000e+00 : f32
    %158 = vector.broadcast %cst_61 : f32 to vector<8x128xf32>
    %159 = arith.mulf %154, %158 : vector<8x128xf32>
    %160 = arith.subf %157, %159 : vector<8x128xf32>
    %cst_62 = arith.constant 1.000000e+00 : f32
    %161 = vector.broadcast %cst_62 : f32 to vector<8x128xf32>
    %162 = arith.cmpf ogt, %160, %161 : vector<8x128xf32>
    %163 = arith.extui %162 : vector<8x128xi1> to vector<8x128xi32>
    %164 = arith.sitofp %163 : vector<8x128xi32> to vector<8x128xf32>
    %165 = arith.truncf %164 : vector<8x128xf32> to vector<8x128xbf16>
    %c0_63 = arith.constant 0 : index
    %166 = arith.index_cast %148 : i32 to index
    %c0_64 = arith.constant 0 : index
    %167 = vector.load %arg5[%c0_63, %166, %c0_64] : memref<1x64x128xbf16, #tpu.memory_space<vmem>>, vector<1x8x128xbf16>
    %168 = vector.shape_cast %167 : vector<1x8x128xbf16> to vector<8x128xbf16>
    %169 = vector.shape_cast %165 : vector<8x128xbf16> to vector<1x8x128xbf16>
    tpu.vector_store %arg5[%c0_63, %166, %c0_64], %169 {strides = array<i32>} : memref<1x64x128xbf16, #tpu.memory_space<vmem>>, vector<1x8x128xbf16>,
    %c7_i32 = arith.constant 7 : i32
    %c8_i32_65 = arith.constant 8 : i32
    %170 = arith.muli %c7_i32, %c8_i32_65 : i32
    %171 = tpu.assume_multiple %170, 8 : i32
    %172 = arith.index_cast %171 : i32 to index
    %c0_66 = arith.constant 0 : index
    %173 = vector.load %arg7[%172, %c0_66] : memref<64x128xf32, #tpu.memory_space<vmem>>, vector<8x128xf32>
    %cst_67 = arith.constant 1.000000e+00 : f32
    %174 = vector.broadcast %cst_67 : f32 to vector<8x128xf32>
    %175 = arith.cmpf ogt, %160, %174 : vector<8x128xf32>
    %176 = arith.extui %175 : vector<8x128xi1> to vector<8x128xi32>
    %177 = arith.sitofp %176 : vector<8x128xi32> to vector<8x128xf32>
    %cst_68 = arith.constant 0.949999988 : f32
    %178 = vector.broadcast %cst_68 : f32 to vector<8x128xf32>
    %179 = arith.mulf %178, %160 : vector<8x128xf32>
    %180 = arith.addf %179, %173 : vector<8x128xf32>
    %cst_69 = arith.constant 1.000000e+00 : f32
    %181 = vector.broadcast %cst_69 : f32 to vector<8x128xf32>
    %182 = arith.mulf %177, %181 : vector<8x128xf32>
    %183 = arith.subf %180, %182 : vector<8x128xf32>
    %cst_70 = arith.constant 1.000000e+00 : f32
    %184 = vector.broadcast %cst_70 : f32 to vector<8x128xf32>
    %185 = arith.cmpf ogt, %183, %184 : vector<8x128xf32>
    %186 = arith.extui %185 : vector<8x128xi1> to vector<8x128xi32>
    %187 = arith.sitofp %186 : vector<8x128xi32> to vector<8x128xf32>
    %188 = arith.truncf %187 : vector<8x128xf32> to vector<8x128xbf16>
    %c0_71 = arith.constant 0 : index
    %189 = arith.index_cast %171 : i32 to index
    %c0_72 = arith.constant 0 : index
    %190 = vector.load %arg5[%c0_71, %189, %c0_72] : memref<1x64x128xbf16, #tpu.memory_space<vmem>>, vector<1x8x128xbf16>
    %191 = vector.shape_cast %190 : vector<1x8x128xbf16> to vector<8x128xbf16>
    %192 = vector.shape_cast %188 : vector<8x128xbf16> to vector<1x8x128xbf16>
    tpu.vector_store %arg5[%c0_71, %189, %c0_72], %192 {strides = array<i32>} : memref<1x64x128xbf16, #tpu.memory_space<vmem>>, vector<1x8x128xbf16>,
    %c8_i32_73 = arith.constant 8 : i32
    %c0_74 = arith.constant 0 : index
    %c0_75 = arith.constant 0 : index
    %193 = vector.load %arg6[%c0_74, %c0_75] : memref<8x128xf32, #tpu.memory_space<vmem>>, vector<8x128xf32>
    tpu.vector_store %arg6[%c0_74, %c0_75], %183 {strides = array<i32>} : memref<8x128xf32, #tpu.memory_space<vmem>>, vector<8x128xf32>,
    return
  }
  func.func @transform_0(%arg0: i32, %arg1: i32) -> (i32, i32, i32) {
    %c0_i32 = arith.constant 0 : i32
    %c0_i32_0 = arith.constant 0 : i32
    %c0_i32_1 = arith.constant 0 : i32
    return %arg1, %c0_i32, %c0_i32_0 : i32, i32, i32
  }
  func.func @transform_1(%arg0: i32, %arg1: i32) -> (i32, i32) {
    %c0_i32 = arith.constant 0 : i32
    %c0_i32_0 = arith.constant 0 : i32
    return %c0_i32, %arg0 : i32, i32
  }
  func.func @transform_2(%arg0: i32, %arg1: i32) -> (i32, i32) {
    %c0_i32 = arith.constant 0 : i32
    %c0_i32_0 = arith.constant 0 : i32
    return %c0_i32, %arg0 : i32, i32
  }
  func.func @transform_3(%arg0: i32, %arg1: i32) -> (i32, i32, i32) {
    %c0_i32 = arith.constant 0 : i32
    %c0_i32_0 = arith.constant 0 : i32
    return %arg1, %c0_i32, %arg0 : i32, i32, i32
  }
  func.func @transform_4(%arg0: i32, %arg1: i32) -> (i32, i32) {
    %c0_i32 = arith.constant 0 : i32
    %c0_i32_0 = arith.constant 0 : i32
    return %c0_i32, %arg0 : i32, i32
  }
}

</mosaic_0001>

<llo_original>
// kernel: audio_cortex_rollout.1
$region0: #{audio_cortex_rollout.1}
  #allocation0 [shape = 'u32[]', space=smem, size = 0x4, offset = 0x4, fixed_abs, tag = 'smem constant byte address 0x4 - core index']
  #allocation1 [shape = 'u32[72,128]{1,0:T(1,128)}', space=vmem, size = 0x9000, scoped, tag = 'internal scratch']
  #allocation2 [shape = 'f32[64,128]{1,0:T(8,128)}', space=vmem, size = 0x8000, scoped, tag = 'scratch operand']
  %s0 = inlined_call_operand.vmem [shape: bf16[1,64,32], index: 0, kind: input, shape index: {}]
  %s1 = inlined_call_operand.vmem [shape: bf16[32,128], index: 1, kind: input, shape index: {}]
  %s2 = inlined_call_operand.vmem [shape: f32[8,128], index: 2, kind: input, shape index: {}, may-alias: {2,4}]
  %s3 = inlined_call_operand.hbm [shape: bf16[1,64,128], index: 3, kind: output, shape index: {0}]
  %s4 = inlined_call_operand.vmem [shape: f32[8,128], index: 4, kind: output, shape index: {1}, may-alias: {2,4}]
  %5 = xla_tuple %s3, %s4
  %s6 = sld [smem:[#allocation0]]
  $region34: #{audio_cortex_rollout.1} parent=0
    _
  %s8 = ssub.s32 1, %s6
  %s9 = scalar_select 0, %s8, %s6
  $region1: #{audio_cortex_rollout.1} parent=0
    #allocation3 [shape = 'u8[16384]{0}', space=vmem, size = 0x4000, scoped, tag = 'output window, operand 0, single buffered']
    #allocation4 [shape = 's32[1]{0}', space=sflag, size = 0x4, scoped, tag = 'scoped memory for audio_cortex_rollout.1']
    %10 = vsyncpa [#allocation4], 0
    // Predicated region
    $region2: #{audio_cortex_rollout.1} parent=1 // pred_check
      _
    $region3: #{audio_cortex_rollout.1} parent=1 // pred_check_branch
      %12 = sbr.rel (0) target = $region5
    $region4: #{audio_cortex_rollout.1} parent=1 // pred_region
      _
    $region5: #{audio_cortex_rollout.1} parent=1 // pred_fallthru
      _
    // Predicated region
    $region6: #{audio_cortex_rollout.1} parent=1 // pred_check
      _
    $region7: #{audio_cortex_rollout.1} parent=1 // pred_check_branch
      %14 = sbr.rel (0) target = $region9
    $region8: #{audio_cortex_rollout.1} parent=1 // pred_region
      _
    $region9: #{audio_cortex_rollout.1} parent=1 // pred_fallthru
      _
    // Predicated region
    $region10: #{audio_cortex_rollout.1} parent=1 // pred_check
      _
    $region11: #{audio_cortex_rollout.1} parent=1 // pred_check_branch
      %16 = sbr.rel (0) target = $region13
    $region12: #{audio_cortex_rollout.1} parent=1 // pred_region
      _
    $region13: #{audio_cortex_rollout.1} parent=1 // pred_fallthru
      _
    %p18 = scmp.eq.s32.totalorder 0, 0
    // Predicated region
    $region14: #{audio_cortex_rollout.1} parent=1 // pred_check
      %p19 = pneg %p18
    $region15: #{audio_cortex_rollout.1} parent=1 // pred_check_branch
      %21 = sbr.rel (%p19) target = $region17
    $region16: #{audio_cortex_rollout.1} parent=1 // pred_region
      %v22 = vld [vmem:[%s2] sm:$0xff]
      %23 = vst [vmem:[%s4] sm:$0xff] %v22
    $region17: #{audio_cortex_rollout.1} parent=1 // pred_fallthru
      _
    %v24 = vld [vmem:[%s0] sm:$0xf]
    %v25 = vld [vmem:[%s0 + $0x4] sm:$0xf]
    %v26 = vld [vmem:[%s0 + $0x8] sm:$0xf]
    %v27 = vld [vmem:[%s0 + $0xc] sm:$0xf]
    %v28 = vld [vmem:[%s0 + $0x10] sm:$0xf]
    %v29 = vld [vmem:[%s0 + $0x14] sm:$0xf]
    %v30 = vld [vmem:[%s0 + $0x18] sm:$0xf]
    %v31 = vld [vmem:[%s0 + $0x1c] sm:$0xf]
    %v32 = vld [vmem:[%s1] sm:$0xf]
    %v33 = vld [vmem:[%s1 + $0x4] sm:$0xf]
    %v34 = vld [vmem:[%s1 + $0x8] sm:$0xf]
    %v35 = vld [vmem:[%s1 + $0xc] sm:$0xf]
    %v44 = vunpack.c.l.b16 %v24
    %v45 = vunpack.c.l.b16 %v25
    %v46 = vunpack.c.l.b16 %v26
    %v47 = vunpack.c.l.b16 %v27
    %v48 = vunpack.c.l.b16 %v28
    %v49 = vunpack.c.l.b16 %v29
    %v50 = vunpack.c.l.b16 %v30
    %v51 = vunpack.c.l.b16 %v31
    %v52 = vpack.c.b16 %v45, %v44
    %v53 = vpack.c.b16 %v47, %v46
    %v54 = vpack.c.b16 %v49, %v48
    %v55 = vpack.c.b16 %v51, %v50
    %v60 = vunpack.c.l.b16 %v32
    %v61 = vunpack.c.l.b16 %v33
    %v62 = vunpack.c.l.b16 %v34
    %v63 = vunpack.c.l.b16 %v35
    %v64 = vpack.c.b16 %v61, %v60
    %v65 = vpack.c.b16 %v63, %v62
    %vm68 = vcmask 261120
    %v70 = vsel %vm68, %v52, 0
    %v73 = vsel %vm68, %v53, 0
    %v76 = vsel %vm68, %v54, 0
    %v79 = vsel %vm68, %v55, 0
    %81 = vmatpush.bf16.msra.mxu0 0
    %82 = vmatpush.bf16.msra.mxu0 0
    %83 = vmatpush.bf16.msra.mxu0 0
    %84 = vmatpush.bf16.msra.mxu0 0
    %85 = vmatpush.bf16.msra.mxu0 0
    %86 = vmatpush.bf16.msra.mxu0 0
    %87 = vmatpush.bf16.msra.mxu0 %v65
    %88 = vmatpush.bf16.msra.mxu0 %v64
    %89 = vmatmul.bf16.gmra.mxu0 %v70
    %v90 = vpop.f32.mrf.mxu0
    %v91 = vadd.f32 0.0, %v90
    %v92 = vpop.f32.mrf.mxu0
    %v93 = vadd.f32 0.0, %v92
    %94 = vmatmul.bf16.gmra.mxu0 %v73
    %v95 = vpop.f32.mrf.mxu0
    %v96 = vadd.f32 0.0, %v95
    %v97 = vpop.f32.mrf.mxu0
    %v98 = vadd.f32 0.0, %v97
    %99 = vmatmul.bf16.gmra.mxu0 %v76
    %v100 = vpop.f32.mrf.mxu0
    %v101 = vadd.f32 0.0, %v100
    %v102 = vpop.f32.mrf.mxu0
    %v103 = vadd.f32 0.0, %v102
    %104 = vmatmul.bf16.gmra.mxu0 %v79
    %v105 = vpop.f32.mrf.mxu0
    %v106 = vadd.f32 0.0, %v105
    %v107 = vpop.f32.mrf.mxu0
    %v108 = vadd.f32 0.0, %v107
    %109 = vdwg.mxu0
    %110 = vst [vmem:[#allocation2] sm:$0xff] %v91
    %111 = vst [vmem:[#allocation2 + $0x8] sm:$0xff] %v93
    %112 = vst [vmem:[#allocation2 + $0x10] sm:$0xff] %v96
    %113 = vst [vmem:[#allocation2 + $0x18] sm:$0xff] %v98
    %114 = vst [vmem:[#allocation2 + $0x20] sm:$0xff] %v101
    %115 = vst [vmem:[#allocation2 + $0x28] sm:$0xff] %v103
    %116 = vst [vmem:[#allocation2 + $0x30] sm:$0xff] %v106
    %117 = vst [vmem:[#allocation2 + $0x38] sm:$0xff] %v108
    %v118 = vld [vmem:[%s4] sm:$0xff]
    %v119 = vld [vmem:[#allocation2] sm:$0xff]
    %vm120 = vcmp.gt.f32.partialorder %v118, 1.0
    %v121 = vsel %vm120, 1, 0
    %v122 = vcvt.s32.f32 %v121
    %v123 = vmul.f32 %v118, 0.95
    %v124 = vadd.f32 %v123, %v119
    %v125 = vsub.f32 %v124, %v122
    %vm126 = vcmp.gt.f32.partialorder %v125, 1.0
    %v127 = vsel %vm126, 1, 0
    %v128 = vcvt.s32.f32 %v127
    %v129 = vpack.c.bf16 %v128, %v128
    %130 = vst [vmem:[#allocation3] sm:$0xf] %v129
    %s131 = scalar_lea.vmem [#allocation2], 8
    %v132 = vld [vmem:[%s131] sm:$0xff]
    %v133 = vmul.f32 %v125, 0.95
    %v134 = vadd.f32 %v133, %v132
    %v135 = vsub.f32 %v134, %v128
    %vm136 = vcmp.gt.f32.partialorder %v135, 1.0
    %v137 = vsel %vm136, 1, 0
    %v138 = vcvt.s32.f32 %v137
    %v139 = vpack.c.bf16 %v138, %v138
    %s140 = scalar_lea.vmem [#allocation3], 4
    %141 = vst [vmem:[%s140] sm:$0xf] %v139
    %s142 = scalar_lea.vmem [#allocation2], 16
    %v143 = vld [vmem:[%s142] sm:$0xff]
    %v144 = vmul.f32 %v135, 0.95
    %v145 = vadd.f32 %v144, %v143
    %v146 = vsub.f32 %v145, %v138
    %vm147 = vcmp.gt.f32.partialorder %v146, 1.0
    %v148 = vsel %vm147, 1, 0
    %v149 = vcvt.s32.f32 %v148
    %v150 = vpack.c.bf16 %v149, %v149
    %s151 = scalar_lea.vmem [#allocation3], 8
    %152 = vst [vmem:[%s151] sm:$0xf] %v150
    %s153 = scalar_lea.vmem [#allocation2], 24
    %v154 = vld [vmem:[%s153] sm:$0xff]
    %v155 = vmul.f32 %v146, 0.95
    %v156 = vadd.f32 %v155, %v154
    %v157 = vsub.f32 %v156, %v149
    %vm158 = vcmp.gt.f32.partialorder %v157, 1.0
    %v159 = vsel %vm158, 1, 0
    %v160 = vcvt.s32.f32 %v159
    %v161 = vpack.c.bf16 %v160, %v160
    %s162 = scalar_lea.vmem [#allocation3], 12
    %163 = vst [vmem:[%s162] sm:$0xf] %v161
    %s164 = scalar_lea.vmem [#allocation2], 32
    %v165 = vld [vmem:[%s164] sm:$0xff]
    %v166 = vmul.f32 %v157, 0.95
    %v167 = vadd.f32 %v166, %v165
    %v168 = vsub.f32 %v167, %v160
    %vm169 = vcmp.gt.f32.partialorder %v168, 1.0
    %v170 = vsel %vm169, 1, 0
    %v171 = vcvt.s32.f32 %v170
    %v172 = vpack.c.bf16 %v171, %v171
    %s173 = scalar_lea.vmem [#allocation3], 16
    %174 = vst [vmem:[%s173] sm:$0xf] %v172
    %s175 = scalar_lea.vmem [#allocation2], 40
    %v176 = vld [vmem:[%s175] sm:$0xff]
    %v177 = vmul.f32 %v168, 0.95
    %v178 = vadd.f32 %v177, %v176
    %v179 = vsub.f32 %v178, %v171
    %vm180 = vcmp.gt.f32.partialorder %v179, 1.0
    %v181 = vsel %vm180, 1, 0
    %v182 = vcvt.s32.f32 %v181
    %v183 = vpack.c.bf16 %v182, %v182
    %s184 = scalar_lea.vmem [#allocation3], 20
    %185 = vst [vmem:[%s184] sm:$0xf] %v183
    %s186 = scalar_lea.vmem [#allocation2], 48
    %v187 = vld [vmem:[%s186] sm:$0xff]
    %v188 = vmul.f32 %v179, 0.95
    %v189 = vadd.f32 %v188, %v187
    %v190 = vsub.f32 %v189, %v182
    %vm191 = vcmp.gt.f32.partialorder %v190, 1.0
    %v192 = vsel %vm191, 1, 0
    %v193 = vcvt.s32.f32 %v192
    %v194 = vpack.c.bf16 %v193, %v193
    %s195 = scalar_lea.vmem [#allocation3], 24
    %196 = vst [vmem:[%s195] sm:$0xf] %v194
    %s197 = scalar_lea.vmem [#allocation2], 56
    %v198 = vld [vmem:[%s197] sm:$0xff]
    %v199 = vmul.f32 %v190, 0.95
    %v200 = vadd.f32 %v199, %v198
    %v201 = vsub.f32 %v200, %v193
    %vm202 = vcmp.gt.f32.partialorder %v201, 1.0
    %v203 = vsel %vm202, 1, 0
    %v204 = vcvt.s32.f32 %v203
    %v205 = vpack.c.bf16 %v204, %v204
    %s206 = scalar_lea.vmem [#allocation3], 28
    %207 = vst [vmem:[%s206] sm:$0xf] %v205
    %208 = vst [vmem:[%s4] sm:$0xff] %v201
    // Predicated region
    $region18: #{audio_cortex_rollout.1} parent=1 // pred_check
      _
    $region19: #{audio_cortex_rollout.1} parent=1 // pred_check_branch
      %210 = sbr.rel (0) target = $region21
    $region20: #{audio_cortex_rollout.1} parent=1 // pred_region
      %212 = vsyncadd [#allocation4], 0
      %s213 = sshll.u32 [#allocation3], 4
      %s214 = int_to_ptr.vmem [resolvable:$true] %s213
      %s215 = sshll.u32 %s3, 4
      %s216 = int_to_ptr.hbm [resolvable:$true] %s215
      %221 = dma.vmem_to_hbm [thread:$0]  %s214, 512, %s216, [#allocation4], 64, 64, 4
    $region21: #{audio_cortex_rollout.1} parent=1 // pred_fallthru
      _
    // Predicated region
    $region22: #{audio_cortex_rollout.1} parent=1 // pred_check
      _
    $region23: #{audio_cortex_rollout.1} parent=1 // pred_check_branch
      %223 = sbr.rel (0) target = $region25
    $region24: #{audio_cortex_rollout.1} parent=1 // pred_region
      _
    $region25: #{audio_cortex_rollout.1} parent=1 // pred_fallthru
      _
    // Predicated region
    $region26: #{audio_cortex_rollout.1} parent=1 // pred_check
      _
    $region27: #{audio_cortex_rollout.1} parent=1 // pred_check_branch
      %225 = sbr.rel (0) target = $region29
    $region28: #{audio_cortex_rollout.1} parent=1 // pred_region
      %227 = dma.done [#allocation4], 512
    $region29: #{audio_cortex_rollout.1} parent=1 // pred_fallthru
      _
    // Predicated region
    $region30: #{audio_cortex_rollout.1} parent=1 // pred_check
      _
    $region31: #{audio_cortex_rollout.1} parent=1 // pred_check_branch
      %229 = sbr.rel (0) target = $region33
    $region32: #{audio_cortex_rollout.1} parent=1 // pred_region
      _
    $region33: #{audio_cortex_rollout.1} parent=1 // pred_fallthru
      _
    %230 = vsyncpa [#allocation4], 1

</llo_original>
